<compile_context>
chip_gen: v6e
topology: v6e:2x2x1
jax: 0.10.0
libtpu: 0.0.40
codegen_flags: <defaults>
</compile_context>

<pallas_src>
import functools

import jax
import jax.numpy as jnp
from jax.experimental import pallas as pl
from jax.experimental.pallas import tpu as pltpu

LANE = 128  # TPU lane width


def mlp_kernel(x_ref, w1_ref, b1_ref, w2_ref, b2_ref,
               w3_ref, b3_ref, w4_ref, b4_ref, o_ref, *, n_valid):
    # All compute in f32 (f32 accumulation on the MXU); the kernel is
    # HBM-bound so f32 matmuls on the small layers are free.
    x = x_ref[...]

    # fc1 + relu
    h = jnp.dot(x, w1_ref[...], preferred_element_type=jnp.float32)
    h = jnp.maximum(h + b1_ref[...], 0.0)
    # fc2 + relu (hidden dims lane-padded to 128; padded columns stay exactly 0)
    h = jnp.dot(h, w2_ref[...], preferred_element_type=jnp.float32)
    h = jnp.maximum(h + b2_ref[...], 0.0)
    # fc3 + relu
    h = jnp.dot(h, w3_ref[...], preferred_element_type=jnp.float32)
    h = jnp.maximum(h + b3_ref[...], 0.0)
    # fc4
    logits = jnp.dot(h, w4_ref[...], preferred_element_type=jnp.float32)
    logits = logits + b4_ref[...]

    # Mask lane-padding columns so they don't corrupt the normalizer, then
    # numerically stable log_softmax over the last axis.
    col = jax.lax.broadcasted_iota(jnp.int32, logits.shape, 1)
    logits = jnp.where(col < n_valid, logits, -jnp.inf)
    m = jnp.max(logits, axis=-1, keepdims=True)
    shifted = logits - m
    lse = jnp.log(jnp.sum(jnp.exp(shifted), axis=-1, keepdims=True))
    # Lane-dense 128-wide store (unmasked vst); bf16 halves output writeback.
    o_ref[...] = (shifted - lse).astype(o_ref.dtype)


def _round_up(n, m):
    return ((n + m - 1) // m) * m


def _pad2(a, rows, cols):
    return jnp.pad(a, ((0, rows - a.shape[0]), (0, cols - a.shape[1])))


def prepare_params(params, param_dtype=jnp.float32):
    """Lane-pad + cast weights/biases ONCE (reuse across forward calls).

    params: list of (W (in,out), b (1,out)) f32. Returns (flat tuple, n_classes).
    """
    (w1, b1), (w2, b2), (w3, b3), (w4, b4) = params
    d_in = w1.shape[0]
    n_classes = w4.shape[1]
    w1p = _pad2(w1, d_in, LANE).astype(param_dtype)
    w2p = _pad2(w2, LANE, LANE).astype(param_dtype)
    w3p = _pad2(w3, LANE, LANE).astype(param_dtype)
    w4p = _pad2(w4, LANE, LANE).astype(param_dtype)
    b1p = _pad2(b1, 1, LANE).astype(jnp.float32)
    b2p = _pad2(b2, 1, LANE).astype(jnp.float32)
    b3p = _pad2(b3, 1, LANE).astype(jnp.float32)
    b4p = _pad2(b4, 1, LANE).astype(jnp.float32)
    prepared = (w1p, b1p, w2p, b2p, w3p, b3p, w4p, b4p)
    return prepared, n_classes


def mlp_forward(x, prepared, *, n_classes=10, tile_b=1024,
                out_dtype=jnp.bfloat16):
    """x: (B, 784) f32 (DMA'd as-is, no wrapper cast/pad). prepared: see prepare_params."""
    w1p, b1p, w2p, b2p, w3p, b3p, w4p, b4p = prepared
    B, D = x.shape
    assert w1p.shape[0] == D

    # Batch tile: clamp for small batches, keep it a multiple of 16 (bf16
    # sublane packing of the output block). No padding of B: the cdiv grid
    # handles a partial final tile with masked output writeback.
    tile_b = max(16, (min(tile_b, _round_up(B, 16)) // 16) * 16)
    # v7x has 2 TensorCores: when there's enough work, make sure the
    # "parallel" batch axis has at least 2 grid steps so both TCs get a share.
    if B >= 256 and pl.cdiv(B, tile_b) < 2:
        tile_b = _round_up(pl.cdiv(B, 2), 16)
    grid = (pl.cdiv(B, tile_b),)

    def full(shape):
        # same block every grid step -> stays resident in VMEM, no re-DMA
        return pl.BlockSpec(shape, lambda i: (0,) * len(shape))

    # Advisory cost estimate so XLA can overlap surrounding ops.
    nbytes = lambda a: a.size * a.dtype.itemsize
    weight_bytes = sum(nbytes(a) for a in prepared)
    flops = 2 * B * (D * 128 + 128 * 64 + 64 * 32 + 32 * n_classes)
    bytes_accessed = (nbytes(x) + B * LANE * jnp.dtype(out_dtype).itemsize
                      + weight_bytes)
    cost = pl.CostEstimate(flops=flops, transcendentals=B * (LANE + 1),
                           bytes_accessed=bytes_accessed)

    kern = functools.partial(mlp_kernel, n_valid=n_classes)

    out = pl.pallas_call(
        kern,
        out_shape=jax.ShapeDtypeStruct((B, LANE), out_dtype),
        grid_spec=pltpu.PrefetchScalarGridSpec(
            num_scalar_prefetch=0,
            grid=grid,
            in_specs=[
                pl.BlockSpec((tile_b, D), lambda i: (i, 0)),
                full(w1p.shape), full(b1p.shape),
                full(w2p.shape), full(b2p.shape),
                full(w3p.shape), full(b3p.shape),
                full(w4p.shape), full(b4p.shape),
            ],
            out_specs=pl.BlockSpec((tile_b, LANE), lambda i: (i, 0)),
        ),
        compiler_params=pltpu.CompilerParams(
            dimension_semantics=("parallel",),
            vmem_limit_bytes=32 << 20,  # ~10 MiB footprint at tile_b=1024
        ),
        cost_estimate=cost,
    )(x, *prepared)

    # Return f32 log-probs for the valid classes (module semantics).
    return out[:, :n_classes].astype(jnp.float32)


def init_params(key):
    """Deterministic params. Linear(in, out): W stored as (in, out), b as (1, out)."""
    dims = [(28 * 28, 128), (128, 64), (64, 32), (32, 10)]
    params = []
    for d_in, d_out in dims:
        key, kw, kb = jax.random.split(key, 3)
        bound = 1.0 / jnp.sqrt(d_in)  # torch nn.Linear default init range
        w = jax.random.uniform(kw, (d_in, d_out), jnp.float32, -bound, bound)
        b = jax.random.uniform(kb, (1, d_out), jnp.float32, -bound, bound)
        params.append((w, b))
    return params


def mlp_reference(x, params):
    h = x
    for i, (w, b) in enumerate(params):
        h = h @ w + b
        if i < len(params) - 1:
            h = jnp.maximum(h, 0.0)
    return jax.nn.log_softmax(h, axis=1)


if __name__ == "__main__":
    key = jax.random.PRNGKey(0)
    kp, kx = jax.random.split(key)
    params = init_params(kp)
    prepared, n_classes = prepare_params(params)  # pad/cast weights ONCE

    B = 32
    x = jax.random.normal(kx, (B, 28 * 28), jnp.float32)

    out = mlp_forward(x, prepared, n_classes=n_classes)
    out = jax.block_until_ready(out)

    ref = mlp_reference(x, params)
    assert out.shape == (B, 10)
    # f32 compute; only the bf16 output store quantizes the log-probs.
    assert jnp.allclose(out, ref, atol=5e-2, rtol=2e-2), "mismatch vs reference"
    print("KERNEL_OK")
</pallas_src>

<mosaic_0001>
module attributes {stable_mosaic.version = 11 : i64} {
  func.func @mlp_kernel(%arg0: i32, %arg1: memref<32x784xf32, #tpu.memory_space<vmem>>, %arg2: memref<784x128xf32, #tpu.memory_space<vmem>>, %arg3: memref<1x128xf32, #tpu.memory_space<vmem>>, %arg4: memref<128x128xf32, #tpu.memory_space<vmem>>, %arg5: memref<1x128xf32, #tpu.memory_space<vmem>>, %arg6: memref<128x128xf32, #tpu.memory_space<vmem>>, %arg7: memref<1x128xf32, #tpu.memory_space<vmem>>, %arg8: memref<128x128xf32, #tpu.memory_space<vmem>>, %arg9: memref<1x128xf32, #tpu.memory_space<vmem>>, %arg10: memref<32x128xbf16, #tpu.memory_space<vmem>>) attributes {dimension_semantics = [#tpu.dimension_semantics<parallel>], iteration_bounds = array<i64: 1>, scalar_prefetch = 0 : i64, scratch_operands = 0 : i64, tpu.core_type = #tpu.core_type<tc>, window_params = [{transform_indices = @transform_0, window_bounds = array<i64: 32, 784>}, {pipeline_mode = #tpu.pipeline_mode<synchronous>, transform_indices = @transform_1, window_bounds = array<i64: 784, 128>}, {pipeline_mode = #tpu.pipeline_mode<synchronous>, transform_indices = @transform_2, window_bounds = array<i64: 1, 128>}, {pipeline_mode = #tpu.pipeline_mode<synchronous>, transform_indices = @transform_3, window_bounds = array<i64: 128, 128>}, {pipeline_mode = #tpu.pipeline_mode<synchronous>, transform_indices = @transform_4, window_bounds = array<i64: 1, 128>}, {pipeline_mode = #tpu.pipeline_mode<synchronous>, transform_indices = @transform_5, window_bounds = array<i64: 128, 128>}, {pipeline_mode = #tpu.pipeline_mode<synchronous>, transform_indices = @transform_6, window_bounds = array<i64: 1, 128>}, {pipeline_mode = #tpu.pipeline_mode<synchronous>, transform_indices = @transform_7, window_bounds = array<i64: 128, 128>}, {pipeline_mode = #tpu.pipeline_mode<synchronous>, transform_indices = @transform_8, window_bounds = array<i64: 1, 128>}, {transform_indices = @transform_9, window_bounds = array<i64: 32, 128>}]} {
    %c0 = arith.constant 0 : index
    %c0_0 = arith.constant 0 : index
    %0 = vector.load %arg1[%c0, %c0_0] : memref<32x784xf32, #tpu.memory_space<vmem>>, vector<32x784xf32>
    %c0_1 = arith.constant 0 : index
    %c0_2 = arith.constant 0 : index
    %1 = vector.load %arg2[%c0_1, %c0_2] : memref<784x128xf32, #tpu.memory_space<vmem>>, vector<784x128xf32>
    %cst = arith.constant dense<0.000000e+00> : vector<32x128xf32>
    %2 = tpu.matmul %0, %1, %cst {dimension_numbers = #tpu.dot_dimension_numbers<[1], [0], [0], [1], [0, 0, 1, 1], [], []>} : vector<32x784xf32>, vector<784x128xf32>, vector<32x128xf32> -> vector<32x128xf32>
    %c0_3 = arith.constant 0 : index
    %c0_4 = arith.constant 0 : index
    %3 = vector.load %arg3[%c0_3, %c0_4] : memref<1x128xf32, #tpu.memory_space<vmem>>, vector<1x128xf32>
    %4 = vector.broadcast %3 : vector<1x128xf32> to vector<32x128xf32>
    %5 = arith.addf %2, %4 : vector<32x128xf32>
    %cst_5 = arith.constant 0.000000e+00 : f32
    %6 = vector.broadcast %cst_5 : f32 to vector<32x128xf32>
    %7 = arith.maximumf %5, %6 : vector<32x128xf32>
    %c0_6 = arith.constant 0 : index
    %c0_7 = arith.constant 0 : index
    %8 = vector.load %arg4[%c0_6, %c0_7] : memref<128x128xf32, #tpu.memory_space<vmem>>, vector<128x128xf32>
    %cst_8 = arith.constant dense<0.000000e+00> : vector<32x128xf32>
    %9 = tpu.matmul %7, %8, %cst_8 {dimension_numbers = #tpu.dot_dimension_numbers<[1], [0], [0], [1], [0, 0, 1, 1], [], []>} : vector<32x128xf32>, vector<128x128xf32>, vector<32x128xf32> -> vector<32x128xf32>
    %c0_9 = arith.constant 0 : index
    %c0_10 = arith.constant 0 : index
    %10 = vector.load %arg5[%c0_9, %c0_10] : memref<1x128xf32, #tpu.memory_space<vmem>>, vector<1x128xf32>
    %11 = vector.broadcast %10 : vector<1x128xf32> to vector<32x128xf32>
    %12 = arith.addf %9, %11 : vector<32x128xf32>
    %cst_11 = arith.constant 0.000000e+00 : f32
    %13 = vector.broadcast %cst_11 : f32 to vector<32x128xf32>
    %14 = arith.maximumf %12, %13 : vector<32x128xf32>
    %c0_12 = arith.constant 0 : index
    %c0_13 = arith.constant 0 : index
    %15 = vector.load %arg6[%c0_12, %c0_13] : memref<128x128xf32, #tpu.memory_space<vmem>>, vector<128x128xf32>
    %cst_14 = arith.constant dense<0.000000e+00> : vector<32x128xf32>
    %16 = tpu.matmul %14, %15, %cst_14 {dimension_numbers = #tpu.dot_dimension_numbers<[1], [0], [0], [1], [0, 0, 1, 1], [], []>} : vector<32x128xf32>, vector<128x128xf32>, vector<32x128xf32> -> vector<32x128xf32>
    %c0_15 = arith.constant 0 : index
    %c0_16 = arith.constant 0 : index
    %17 = vector.load %arg7[%c0_15, %c0_16] : memref<1x128xf32, #tpu.memory_space<vmem>>, vector<1x128xf32>
    %18 = vector.broadcast %17 : vector<1x128xf32> to vector<32x128xf32>
    %19 = arith.addf %16, %18 : vector<32x128xf32>
    %cst_17 = arith.constant 0.000000e+00 : f32
    %20 = vector.broadcast %cst_17 : f32 to vector<32x128xf32>
    %21 = arith.maximumf %19, %20 : vector<32x128xf32>
    %c0_18 = arith.constant 0 : index
    %c0_19 = arith.constant 0 : index
    %22 = vector.load %arg8[%c0_18, %c0_19] : memref<128x128xf32, #tpu.memory_space<vmem>>, vector<128x128xf32>
    %cst_20 = arith.constant dense<0.000000e+00> : vector<32x128xf32>
    %23 = tpu.matmul %21, %22, %cst_20 {dimension_numbers = #tpu.dot_dimension_numbers<[1], [0], [0], [1], [0, 0, 1, 1], [], []>} : vector<32x128xf32>, vector<128x128xf32>, vector<32x128xf32> -> vector<32x128xf32>
    %c0_21 = arith.constant 0 : index
    %c0_22 = arith.constant 0 : index
    %24 = vector.load %arg9[%c0_21, %c0_22] : memref<1x128xf32, #tpu.memory_space<vmem>>, vector<1x128xf32>
    %25 = vector.broadcast %24 : vector<1x128xf32> to vector<32x128xf32>
    %26 = arith.addf %23, %25 : vector<32x128xf32>
    %27 = tpu.iota {dimensions = array<i32: 1>} : vector<32x128xi32>
    %c10_i32 = arith.constant 10 : i32
    %28 = vector.broadcast %c10_i32 : i32 to vector<32x128xi32>
    %29 = arith.cmpi slt, %27, %28 : vector<32x128xi32>
    %cst_23 = arith.constant 0xFF800000 : f32
    %30 = vector.broadcast %cst_23 : f32 to vector<32x128xf32>
    %31 = arith.select %29, %26, %30 : vector<32x128xi1>, vector<32x128xf32>
    %cst_24 = arith.constant dense<0xFF800000> : vector<32xf32>
    %32 = vector.multi_reduction <maximumf>, %31, %cst_24 [1] : vector<32x128xf32> to vector<32xf32>
    %33 = vector.shape_cast %32 : vector<32xf32> to vector<32x1xf32>
    %34 = vector.broadcast %33 : vector<32x1xf32> to vector<32x128xf32>
    %35 = arith.subf %31, %34 : vector<32x128xf32>
    %36 = math.exp %35 : vector<32x128xf32>
    %cst_25 = arith.constant dense<0.000000e+00> : vector<32xf32>
    %37 = vector.multi_reduction <add>, %36, %cst_25 [1] : vector<32x128xf32> to vector<32xf32>
    %38 = vector.shape_cast %37 : vector<32xf32> to vector<32x1xf32>
    %39 = math.log %38 : vector<32x1xf32>
    %40 = vector.broadcast %39 : vector<32x1xf32> to vector<32x128xf32>
    %41 = arith.subf %35, %40 : vector<32x128xf32>
    %42 = arith.truncf %41 : vector<32x128xf32> to vector<32x128xbf16>
    %c0_26 = arith.constant 0 : index
    %c0_27 = arith.constant 0 : index
    %43 = vector.load %arg10[%c0_26, %c0_27] : memref<32x128xbf16, #tpu.memory_space<vmem>>, vector<32x128xbf16>
    tpu.vector_store %arg10[%c0_26, %c0_27], %42 {strides = array<i32>} : memref<32x128xbf16, #tpu.memory_space<vmem>>, vector<32x128xbf16>,
    return
  }
  func.func @transform_0(%arg0: i32) -> (i32, i32) {
    %c0_i32 = arith.constant 0 : i32
    %c0_i32_0 = arith.constant 0 : i32
    return %arg0, %c0_i32 : i32, i32
  }
  func.func @transform_1(%arg0: i32) -> (i32, i32) {
    %c0_i32 = arith.constant 0 : i32
    %c0_i32_0 = arith.constant 0 : i32
    %c0_i32_1 = arith.constant 0 : i32
    return %c0_i32, %c0_i32_0 : i32, i32
  }
  func.func @transform_2(%arg0: i32) -> (i32, i32) {
    %c0_i32 = arith.constant 0 : i32
    %c0_i32_0 = arith.constant 0 : i32
    %c0_i32_1 = arith.constant 0 : i32
    return %c0_i32, %c0_i32_0 : i32, i32
  }
  func.func @transform_3(%arg0: i32) -> (i32, i32) {
    %c0_i32 = arith.constant 0 : i32
    %c0_i32_0 = arith.constant 0 : i32
    %c0_i32_1 = arith.constant 0 : i32
    return %c0_i32, %c0_i32_0 : i32, i32
  }
  func.func @transform_4(%arg0: i32) -> (i32, i32) {
    %c0_i32 = arith.constant 0 : i32
    %c0_i32_0 = arith.constant 0 : i32
    %c0_i32_1 = arith.constant 0 : i32
    return %c0_i32, %c0_i32_0 : i32, i32
  }
  func.func @transform_5(%arg0: i32) -> (i32, i32) {
    %c0_i32 = arith.constant 0 : i32
    %c0_i32_0 = arith.constant 0 : i32
    %c0_i32_1 = arith.constant 0 : i32
    return %c0_i32, %c0_i32_0 : i32, i32
  }
  func.func @transform_6(%arg0: i32) -> (i32, i32) {
    %c0_i32 = arith.constant 0 : i32
    %c0_i32_0 = arith.constant 0 : i32
    %c0_i32_1 = arith.constant 0 : i32
    return %c0_i32, %c0_i32_0 : i32, i32
  }
  func.func @transform_7(%arg0: i32) -> (i32, i32) {
    %c0_i32 = arith.constant 0 : i32
    %c0_i32_0 = arith.constant 0 : i32
    %c0_i32_1 = arith.constant 0 : i32
    return %c0_i32, %c0_i32_0 : i32, i32
  }
  func.func @transform_8(%arg0: i32) -> (i32, i32) {
    %c0_i32 = arith.constant 0 : i32
    %c0_i32_0 = arith.constant 0 : i32
    %c0_i32_1 = arith.constant 0 : i32
    return %c0_i32, %c0_i32_0 : i32, i32
  }
  func.func @transform_9(%arg0: i32) -> (i32, i32) {
    %c0_i32 = arith.constant 0 : i32
    %c0_i32_0 = arith.constant 0 : i32
    return %arg0, %c0_i32 : i32, i32
  }
}

</mosaic_0001>

<llo_original>
// kernel: tpu_custom_call.1
$region0: #{tpu_custom_call.1}
  #allocation0 [shape = 'u32[]', space=smem, size = 0x4, offset = 0x4, fixed_abs, tag = 'smem constant byte address 0x4 - core index']
  #allocation1 [shape = 'u32[144,128]{1,0:T(1,128)}', space=vmem, size = 0x12000, scoped, tag = 'internal scratch']
  %s0 = inlined_call_operand.hbm [shape: f32[32,784], index: 0, kind: input, shape index: {}]
  %s1 = inlined_call_operand.hbm [shape: f32[784,128], index: 1, kind: input, shape index: {}]
  %s2 = inlined_call_operand.vmem [shape: f32[1,128], index: 2, kind: input, shape index: {}]
  %s3 = inlined_call_operand.hbm [shape: f32[128,128], index: 3, kind: input, shape index: {}]
  %s4 = inlined_call_operand.vmem [shape: f32[1,128], index: 4, kind: input, shape index: {}]
  %s5 = inlined_call_operand.hbm [shape: f32[128,128], index: 5, kind: input, shape index: {}]
  %s6 = inlined_call_operand.vmem [shape: f32[1,128], index: 6, kind: input, shape index: {}]
  %s7 = inlined_call_operand.hbm [shape: f32[128,128], index: 7, kind: input, shape index: {}]
  %s8 = inlined_call_operand.vmem [shape: f32[1,128], index: 8, kind: input, shape index: {}]
  %s9 = inlined_call_operand.hbm [shape: bf16[32,128], index: 9, kind: output, shape index: {}]
  %s10 = sld [smem:[#allocation0]]
  $region66: #{tpu_custom_call.1} parent=0
    _
  %s12 = ssub.s32 1, %s10
  %s13 = scalar_select 0, %s12, %s10
  $region1: #{tpu_custom_call.1} parent=0
    #allocation2 [shape = 'u8[114688]{0}', space=vmem, size = 0x1c000, scoped, tag = 'input window, operand 0, single buffered']
    #allocation3 [shape = 's32[1]{0}', space=sflag, size = 0x4, scoped, tag = 'scoped memory for tpu_custom_call.1']
    #allocation4 [shape = 's32[1]{0}', space=sflag, size = 0x4, scoped, tag = 'scoped memory for tpu_custom_call.1']
    #allocation5 [shape = 'u8[401408]{0}', space=vmem, size = 0x62000, scoped, tag = 'input window, operand 1, single buffered']
    #allocation6 [shape = 's32[1]{0}', space=sflag, size = 0x4, scoped, tag = 'scoped memory for tpu_custom_call.1']
    #allocation7 [shape = 'u8[65536]{0}', space=vmem, size = 0x10000, scoped, tag = 'input window, operand 3, single buffered']
    #allocation8 [shape = 'u8[65536]{0}', space=vmem, size = 0x10000, scoped, tag = 'input window, operand 5, single buffered']
    #allocation9 [shape = 's32[1]{0}', space=sflag, size = 0x4, scoped, tag = 'scoped memory for tpu_custom_call.1']
    #allocation10 [shape = 'u8[65536]{0}', space=vmem, size = 0x10000, scoped, tag = 'input window, operand 7, single buffered']
    #allocation11 [shape = 'u8[8192]{0}', space=vmem, size = 0x2000, scoped, tag = 'output window, operand 0, single buffered']
    %14 = vsyncpa [#allocation3], 0
    %15 = vsyncpa [#allocation6], 0
    %16 = vsyncpa [#allocation9], 0
    %17 = vsyncpa [#allocation4], 0
    // Predicated region
    $region2: #{tpu_custom_call.1} parent=1 // pred_check
      _
    $region3: #{tpu_custom_call.1} parent=1 // pred_check_branch
      %19 = sbr.rel (0) target = $region5
    $region4: #{tpu_custom_call.1} parent=1 // pred_region
      %s21 = ssub.s32 3584, 3584
      %22 = vsyncadd [#allocation3], %s21
      %s23 = sshll.u32 [#allocation2], 4
      %s24 = int_to_ptr.vmem [resolvable:$true] %s23
      %29 = dma.hbm_to_vmem [thread:$0]  %s0, 3584, %s24, [#allocation3], 896, 896, 56
    $region5: #{tpu_custom_call.1} parent=1 // pred_fallthru
      _
    // Predicated region
    $region6: #{tpu_custom_call.1} parent=1 // pred_check
      _
    $region7: #{tpu_custom_call.1} parent=1 // pred_check_branch
      %31 = sbr.rel (0) target = $region9
    $region8: #{tpu_custom_call.1} parent=1 // pred_region
      %s33 = ssub.s32 12544, 12544
      %34 = vsyncadd [#allocation6], %s33
      %s35 = sshll.u32 [#allocation5], 4
      %s36 = int_to_ptr.vmem [resolvable:$true] %s35
      %41 = dma.hbm_to_vmem [thread:$0]  %s1, 12544, %s36, [#allocation6], 128, 128, 8
    $region9: #{tpu_custom_call.1} parent=1 // pred_fallthru
      _
    // Predicated region
    $region10: #{tpu_custom_call.1} parent=1 // pred_check
      _
    $region11: #{tpu_custom_call.1} parent=1 // pred_check_branch
      %43 = sbr.rel (0) target = $region13
    $region12: #{tpu_custom_call.1} parent=1 // pred_region
      _
    $region13: #{tpu_custom_call.1} parent=1 // pred_fallthru
      _
    // Predicated region
    $region14: #{tpu_custom_call.1} parent=1 // pred_check
      _
    $region15: #{tpu_custom_call.1} parent=1 // pred_check_branch
      %45 = sbr.rel (0) target = $region17
    $region16: #{tpu_custom_call.1} parent=1 // pred_region
      %s47 = ssub.s32 2048, 2048
      %48 = vsyncadd [#allocation6], %s47
      %s49 = sshll.u32 [#allocation7], 4
      %s50 = int_to_ptr.vmem [resolvable:$true] %s49
      %55 = dma.hbm_to_vmem [thread:$0]  %s3, 2048, %s50, [#allocation6], 128, 128, 8
    $region17: #{tpu_custom_call.1} parent=1 // pred_fallthru
      _
    // Predicated region
    $region18: #{tpu_custom_call.1} parent=1 // pred_check
      _
    $region19: #{tpu_custom_call.1} parent=1 // pred_check_branch
      %57 = sbr.rel (0) target = $region21
    $region20: #{tpu_custom_call.1} parent=1 // pred_region
      _
    $region21: #{tpu_custom_call.1} parent=1 // pred_fallthru
      _
    // Predicated region
    $region22: #{tpu_custom_call.1} parent=1 // pred_check
      _
    $region23: #{tpu_custom_call.1} parent=1 // pred_check_branch
      %59 = sbr.rel (0) target = $region25
    $region24: #{tpu_custom_call.1} parent=1 // pred_region
      %s61 = ssub.s32 2048, 2048
      %62 = vsyncadd [#allocation9], %s61
      %s63 = sshll.u32 [#allocation8], 4
      %s64 = int_to_ptr.vmem [resolvable:$true] %s63
      %69 = dma.hbm_to_vmem [thread:$0]  %s5, 2048, %s64, [#allocation9], 128, 128, 8
    $region25: #{tpu_custom_call.1} parent=1 // pred_fallthru
      _
    // Predicated region
    $region26: #{tpu_custom_call.1} parent=1 // pred_check
      _
    $region27: #{tpu_custom_call.1} parent=1 // pred_check_branch
      %71 = sbr.rel (0) target = $region29
    $region28: #{tpu_custom_call.1} parent=1 // pred_region
      _
    $region29: #{tpu_custom_call.1} parent=1 // pred_fallthru
      _
    // Predicated region
    $region30: #{tpu_custom_call.1} parent=1 // pred_check
      _
    $region31: #{tpu_custom_call.1} parent=1 // pred_check_branch
      %73 = sbr.rel (0) target = $region33
    $region32: #{tpu_custom_call.1} parent=1 // pred_region
      %s75 = ssub.s32 2048, 2048
      %76 = vsyncadd [#allocation9], %s75
      %s77 = sshll.u32 [#allocation10], 4
      %s78 = int_to_ptr.vmem [resolvable:$true] %s77
      %83 = dma.hbm_to_vmem [thread:$0]  %s7, 2048, %s78, [#allocation9], 128, 128, 8
    $region33: #{tpu_custom_call.1} parent=1 // pred_fallthru
      _
    // Predicated region
    $region34: #{tpu_custom_call.1} parent=1 // pred_check
      _
    $region35: #{tpu_custom_call.1} parent=1 // pred_check_branch
      %85 = sbr.rel (0) target = $region37
    $region36: #{tpu_custom_call.1} parent=1 // pred_region
      _
    $region37: #{tpu_custom_call.1} parent=1 // pred_fallthru
      _
    // Predicated region
    $region38: #{tpu_custom_call.1} parent=1 // pred_check
      _
    $region39: #{tpu_custom_call.1} parent=1 // pred_check_branch
      %87 = sbr.rel (0) target = $region41
    $region40: #{tpu_custom_call.1} parent=1 // pred_region
      %88 = dma.done [#allocation3], 3584
    $region41: #{tpu_custom_call.1} parent=1 // pred_fallthru
      _
    // Predicated region
    $region42: #{tpu_custom_call.1} parent=1 // pred_check
      _
    $region43: #{tpu_custom_call.1} parent=1 // pred_check_branch
      %90 = sbr.rel (0) target = $region45
    $region44: #{tpu_custom_call.1} parent=1 // pred_region
      %91 = dma.done [#allocation6], 12544
    $region45: #{tpu_custom_call.1} parent=1 // pred_fallthru
      _
    // Predicated region
    $region46: #{tpu_custom_call.1} parent=1 // pred_check
      _
    $region47: #{tpu_custom_call.1} parent=1 // pred_check_branch
      %93 = sbr.rel (0) target = $region49
    $region48: #{tpu_custom_call.1} parent=1 // pred_region
      %94 = dma.done [#allocation6], 2048
    $region49: #{tpu_custom_call.1} parent=1 // pred_fallthru
      _
    // Predicated region
    $region50: #{tpu_custom_call.1} parent=1 // pred_check
      _
    $region51: #{tpu_custom_call.1} parent=1 // pred_check_branch
      %96 = sbr.rel (0) target = $region53
    $region52: #{tpu_custom_call.1} parent=1 // pred_region
      %97 = dma.done [#allocation9], 2048
    $region53: #{tpu_custom_call.1} parent=1 // pred_fallthru
      _
    // Predicated region
    $region54: #{tpu_custom_call.1} parent=1 // pred_check
      _
    $region55: #{tpu_custom_call.1} parent=1 // pred_check_branch
      %99 = sbr.rel (0) target = $region57
    $region56: #{tpu_custom_call.1} parent=1 // pred_region
      %100 = dma.done [#allocation9], 2048
    $region57: #{tpu_custom_call.1} parent=1 // pred_fallthru
      _
    %v101 = vld [vmem:[#allocation2] sm:$0xff]
    %v102 = vld [vmem:[#allocation2 + $0x8] sm:$0xff]
    %v103 = vld [vmem:[#allocation2 + $0x10] sm:$0xff]
    %v104 = vld [vmem:[#allocation2 + $0x18] sm:$0xff]
    %v105 = vld [vmem:[#allocation2 + $0x20] sm:$0xff]
    %v106 = vld [vmem:[#allocation2 + $0x28] sm:$0xff]
    %v107 = vld [vmem:[#allocation2 + $0x30] sm:$0xff]
    %v108 = vld [vmem:[#allocation2 + $0x38] sm:$0xff]
    %v109 = vld [vmem:[#allocation2 + $0x40] sm:$0xff]
    %v110 = vld [vmem:[#allocation2 + $0x48] sm:$0xff]
    %v111 = vld [vmem:[#allocation2 + $0x50] sm:$0xff]
    %v112 = vld [vmem:[#allocation2 + $0x58] sm:$0xff]
    %v113 = vld [vmem:[#allocation2 + $0x60] sm:$0xff]
    %v114 = vld [vmem:[#allocation2 + $0x68] sm:$0xff]
    %v115 = vld [vmem:[#allocation2 + $0x70] sm:$0xff]
    %v116 = vld [vmem:[#allocation2 + $0x78] sm:$0xff]
    %v117 = vld [vmem:[#allocation2 + $0x80] sm:$0xff]
    %v118 = vld [vmem:[#allocation2 + $0x88] sm:$0xff]
    %v119 = vld [vmem:[#allocation2 + $0x90] sm:$0xff]
    %v120 = vld [vmem:[#allocation2 + $0x98] sm:$0xff]
    %v121 = vld [vmem:[#allocation2 + $0xa0] sm:$0xff]
    %v122 = vld [vmem:[#allocation2 + $0xa8] sm:$0xff]
    %v123 = vld [vmem:[#allocation2 + $0xb0] sm:$0xff]
    %v124 = vld [vmem:[#allocation2 + $0xb8] sm:$0xff]
    %v125 = vld [vmem:[#allocation2 + $0xc0] sm:$0xff]
    %v126 = vld [vmem:[#allocation2 + $0xc8] sm:$0xff]
    %v127 = vld [vmem:[#allocation2 + $0xd0] sm:$0xff]
    %v128 = vld [vmem:[#allocation2 + $0xd8] sm:$0xff]
    %v129 = vld [vmem:[#allocation5] sm:$0xff]
    %v130 = vld [vmem:[#allocation5 + $0x8] sm:$0xff]
    %v131 = vld [vmem:[#allocation5 + $0x10] sm:$0xff]
    %v132 = vld [vmem:[#allocation5 + $0x18] sm:$0xff]
    %v133 = vld [vmem:[#allocation5 + $0x20] sm:$0xff]
    %v134 = vld [vmem:[#allocation5 + $0x28] sm:$0xff]
    %v135 = vld [vmem:[#allocation5 + $0x30] sm:$0xff]
    %v136 = vld [vmem:[#allocation5 + $0x38] sm:$0xff]
    %v137 = vld [vmem:[#allocation5 + $0x40] sm:$0xff]
    %v138 = vld [vmem:[#allocation5 + $0x48] sm:$0xff]
    %v139 = vld [vmem:[#allocation5 + $0x50] sm:$0xff]
    %v140 = vld [vmem:[#allocation5 + $0x58] sm:$0xff]
    %v141 = vld [vmem:[#allocation5 + $0x60] sm:$0xff]
    %v142 = vld [vmem:[#allocation5 + $0x68] sm:$0xff]
    %v143 = vld [vmem:[#allocation5 + $0x70] sm:$0xff]
    %v144 = vld [vmem:[#allocation5 + $0x78] sm:$0xff]
    %v145 = vld [vmem:[#allocation5 + $0x80] sm:$0xff]
    %v146 = vld [vmem:[#allocation5 + $0x88] sm:$0xff]
    %v147 = vld [vmem:[#allocation5 + $0x90] sm:$0xff]
    %v148 = vld [vmem:[#allocation5 + $0x98] sm:$0xff]
    %v149 = vld [vmem:[#allocation5 + $0xa0] sm:$0xff]
    %v150 = vld [vmem:[#allocation5 + $0xa8] sm:$0xff]
    %v151 = vld [vmem:[#allocation5 + $0xb0] sm:$0xff]
    %v152 = vld [vmem:[#allocation5 + $0xb8] sm:$0xff]
    %v153 = vld [vmem:[#allocation5 + $0xc0] sm:$0xff]
    %v154 = vld [vmem:[#allocation5 + $0xc8] sm:$0xff]
    %v155 = vld [vmem:[#allocation5 + $0xd0] sm:$0xff]
    %v156 = vld [vmem:[#allocation5 + $0xd8] sm:$0xff]
    %v157 = vld [vmem:[#allocation5 + $0xe0] sm:$0xff]
    %v158 = vld [vmem:[#allocation5 + $0xe8] sm:$0xff]
    %v159 = vld [vmem:[#allocation5 + $0xf0] sm:$0xff]
    %v160 = vld [vmem:[#allocation5 + $0xf8] sm:$0xff]
    %v161 = vld [vmem:[#allocation5 + $0x100] sm:$0xff]
    %v162 = vld [vmem:[#allocation5 + $0x108] sm:$0xff]
    %v163 = vld [vmem:[#allocation5 + $0x110] sm:$0xff]
    %v164 = vld [vmem:[#allocation5 + $0x118] sm:$0xff]
    %v165 = vld [vmem:[#allocation5 + $0x120] sm:$0xff]
    %v166 = vld [vmem:[#allocation5 + $0x128] sm:$0xff]
    %v167 = vld [vmem:[#allocation5 + $0x130] sm:$0xff]
    %v168 = vld [vmem:[#allocation5 + $0x138] sm:$0xff]
    %v169 = vld [vmem:[#allocation5 + $0x140] sm:$0xff]
    %v170 = vld [vmem:[#allocation5 + $0x148] sm:$0xff]
    %v171 = vld [vmem:[#allocation5 + $0x150] sm:$0xff]
    %v172 = vld [vmem:[#allocation5 + $0x158] sm:$0xff]
    %v173 = vld [vmem:[#allocation5 + $0x160] sm:$0xff]
    %v174 = vld [vmem:[#allocation5 + $0x168] sm:$0xff]
    %v175 = vld [vmem:[#allocation5 + $0x170] sm:$0xff]
    %v176 = vld [vmem:[#allocation5 + $0x178] sm:$0xff]
    %v177 = vld [vmem:[#allocation5 + $0x180] sm:$0xff]
    %v178 = vld [vmem:[#allocation5 + $0x188] sm:$0xff]
    %v179 = vld [vmem:[#allocation5 + $0x190] sm:$0xff]
    %v180 = vld [vmem:[#allocation5 + $0x198] sm:$0xff]
    %v181 = vld [vmem:[#allocation5 + $0x1a0] sm:$0xff]
    %v182 = vld [vmem:[#allocation5 + $0x1a8] sm:$0xff]
    %v183 = vld [vmem:[#allocation5 + $0x1b0] sm:$0xff]
    %v184 = vld [vmem:[#allocation5 + $0x1b8] sm:$0xff]
    %v185 = vld [vmem:[#allocation5 + $0x1c0] sm:$0xff]
    %v186 = vld [vmem:[#allocation5 + $0x1c8] sm:$0xff]
    %v187 = vld [vmem:[#allocation5 + $0x1d0] sm:$0xff]
    %v188 = vld [vmem:[#allocation5 + $0x1d8] sm:$0xff]
    %v189 = vld [vmem:[#allocation5 + $0x1e0] sm:$0xff]
    %v190 = vld [vmem:[#allocation5 + $0x1e8] sm:$0xff]
    %v191 = vld [vmem:[#allocation5 + $0x1f0] sm:$0xff]
    %v192 = vld [vmem:[#allocation5 + $0x1f8] sm:$0xff]
    %v193 = vld [vmem:[#allocation5 + $0x200] sm:$0xff]
    %v194 = vld [vmem:[#allocation5 + $0x208] sm:$0xff]
    %v195 = vld [vmem:[#allocation5 + $0x210] sm:$0xff]
    %v196 = vld [vmem:[#allocation5 + $0x218] sm:$0xff]
    %v197 = vld [vmem:[#allocation5 + $0x220] sm:$0xff]
    %v198 = vld [vmem:[#allocation5 + $0x228] sm:$0xff]
    %v199 = vld [vmem:[#allocation5 + $0x230] sm:$0xff]
    %v200 = vld [vmem:[#allocation5 + $0x238] sm:$0xff]
    %v201 = vld [vmem:[#allocation5 + $0x240] sm:$0xff]
    %v202 = vld [vmem:[#allocation5 + $0x248] sm:$0xff]
    %v203 = vld [vmem:[#allocation5 + $0x250] sm:$0xff]
    %v204 = vld [vmem:[#allocation5 + $0x258] sm:$0xff]
    %v205 = vld [vmem:[#allocation5 + $0x260] sm:$0xff]
    %v206 = vld [vmem:[#allocation5 + $0x268] sm:$0xff]
    %v207 = vld [vmem:[#allocation5 + $0x270] sm:$0xff]
    %v208 = vld [vmem:[#allocation5 + $0x278] sm:$0xff]
    %v209 = vld [vmem:[#allocation5 + $0x280] sm:$0xff]
    %v210 = vld [vmem:[#allocation5 + $0x288] sm:$0xff]
    %v211 = vld [vmem:[#allocation5 + $0x290] sm:$0xff]
    %v212 = vld [vmem:[#allocation5 + $0x298] sm:$0xff]
    %v213 = vld [vmem:[#allocation5 + $0x2a0] sm:$0xff]
    %v214 = vld [vmem:[#allocation5 + $0x2a8] sm:$0xff]
    %v215 = vld [vmem:[#allocation5 + $0x2b0] sm:$0xff]
    %v216 = vld [vmem:[#allocation5 + $0x2b8] sm:$0xff]
    %v217 = vld [vmem:[#allocation5 + $0x2c0] sm:$0xff]
    %v218 = vld [vmem:[#allocation5 + $0x2c8] sm:$0xff]
    %v219 = vld [vmem:[#allocation5 + $0x2d0] sm:$0xff]
    %v220 = vld [vmem:[#allocation5 + $0x2d8] sm:$0xff]
    %v221 = vld [vmem:[#allocation5 + $0x2e0] sm:$0xff]
    %v222 = vld [vmem:[#allocation5 + $0x2e8] sm:$0xff]
    %v223 = vld [vmem:[#allocation5 + $0x2f0] sm:$0xff]
    %v224 = vld [vmem:[#allocation5 + $0x2f8] sm:$0xff]
    %v225 = vld [vmem:[#allocation5 + $0x300] sm:$0xff]
    %v226 = vld [vmem:[#allocation5 + $0x308] sm:$0xff]
    %v227 = vld [vmem:[%s2] sm:$0x1]
    %v229 = vlaneseq
    %v230 = vshrl.u32 %v229, 7
    %v231 = vsub.s32 0, %v230
    %v232 = vrot.slane %v227, %v231
    %vm234 = vcmask 130048
    %v236 = vsel %vm234, %v107, 0
    %v239 = vsel %vm234, %v114, 0
    %v242 = vsel %vm234, %v121, 0
    %v245 = vsel %vm234, %v128, 0
    %247 = vmatprep.subr.mxu0 0.0
    %248 = vmatpush1.msra.mxu0 %v144
    %249 = vmatprep.subr.mxu0 0.0
    %250 = vmatpush1.msra.mxu0 %v143
    %251 = vmatprep.subr.mxu0 0.0
    %252 = vmatpush1.msra.mxu0 %v142
    %253 = vmatprep.subr.mxu0 0.0
    %254 = vmatpush1.msra.mxu0 %v141
    %255 = vmatprep.subr.mxu0 0.0
    %256 = vmatpush1.msra.mxu0 %v140
    %257 = vmatprep.subr.mxu0 0.0
    %258 = vmatpush1.msra.mxu0 %v139
    %259 = vmatprep.subr.mxu0 0.0
    %260 = vmatpush1.msra.mxu0 %v138
    %261 = vmatprep.subr.mxu0 0.0
    %262 = vmatpush1.msra.mxu0 %v137
    %263 = vmatprep.subr.mxu0 0.0
    %264 = vmatpush1.msra.mxu0 %v136
    %265 = vmatprep.subr.mxu0 0.0
    %266 = vmatpush1.msra.mxu0 %v135
    %267 = vmatprep.subr.mxu0 0.0
    %268 = vmatpush1.msra.mxu0 %v134
    %269 = vmatprep.subr.mxu0 0.0
    %270 = vmatpush1.msra.mxu0 %v133
    %271 = vmatprep.subr.mxu0 0.0
    %272 = vmatpush1.msra.mxu0 %v132
    %273 = vmatprep.subr.mxu0 0.0
    %274 = vmatpush1.msra.mxu0 %v131
    %275 = vmatprep.subr.mxu0 0.0
    %276 = vmatpush1.msra.mxu0 %v130
    %277 = vmatprep.subr.mxu0 0.0
    %278 = vmatpush1.msra.mxu0 %v129
    %279 = vmatprep.subr.mxu0 0.0
    %280 = vmatpush2.msra.mxu0 %v160
    %281 = vmatprep.subr.mxu0 0.0
    %282 = vmatpush2.msra.mxu0 %v159
    %283 = vmatprep.subr.mxu0 0.0
    %284 = vmatpush2.msra.mxu0 %v158
    %285 = vmatprep.subr.mxu0 0.0
    %286 = vmatpush2.msra.mxu0 %v157
    %287 = vmatprep.subr.mxu0 0.0
    %288 = vmatpush2.msra.mxu0 %v156
    %289 = vmatprep.subr.mxu0 0.0
    %290 = vmatpush2.msra.mxu0 %v155
    %291 = vmatprep.subr.mxu0 0.0
    %292 = vmatpush2.msra.mxu0 %v154
    %293 = vmatprep.subr.mxu0 0.0
    %294 = vmatpush2.msra.mxu0 %v153
    %295 = vmatprep.subr.mxu0 0.0
    %296 = vmatpush2.msra.mxu0 %v152
    %297 = vmatprep.subr.mxu0 0.0
    %298 = vmatpush2.msra.mxu0 %v151
    %299 = vmatprep.subr.mxu0 0.0
    %300 = vmatpush2.msra.mxu0 %v150
    %301 = vmatprep.subr.mxu0 0.0
    %302 = vmatpush2.msra.mxu0 %v149
    %303 = vmatprep.subr.mxu0 0.0
    %304 = vmatpush2.msra.mxu0 %v148
    %305 = vmatprep.subr.mxu0 0.0
    %306 = vmatpush2.msra.mxu0 %v147
    %307 = vmatprep.subr.mxu0 0.0
    %308 = vmatpush2.msra.mxu0 %v146
    %309 = vmatprep.subr.mxu0 0.0
    %310 = vmatpush2.msra.mxu0 %v145
    %311 = vmatprep.mubr.f32.mxu0 %v102
    %312 = vmatmul.mubr.f32.gmra.mxu0 %v101
    %v313 = vpop.f32.mrf.mxu0
    %v314 = vadd.f32 %v232, %v313
    %v315 = vpop.f32.mrf.mxu0
    %316 = vmatprep.mubr.f32.mxu0 %v109
    %317 = vmatmul.mubr.f32.gmra.mxu0 %v108
    %v318 = vpop.f32.mrf.mxu0
    %v319 = vadd.f32 %v232, %v318
    %v320 = vpop.f32.mrf.mxu0
    %321 = vmatprep.mubr.f32.mxu0 %v116
    %322 = vmatmul.mubr.f32.gmra.mxu0 %v115
    %v323 = vpop.f32.mrf.mxu0
    %v324 = vadd.f32 %v232, %v323
    %v325 = vpop.f32.mrf.mxu0
    %326 = vmatprep.mubr.f32.mxu0 %v123
    %327 = vmatmul.mubr.f32.gmra.mxu0 %v122
    %v328 = vpop.f32.mrf.mxu0
    %v329 = vadd.f32 %v232, %v328
    %v330 = vpop.f32.mrf.mxu0
    %331 = vdwg.mxu0
    %332 = vmatprep.subr.mxu0 0.0
    %333 = vmatpush1.msra.mxu0 %v176
    %334 = vmatprep.subr.mxu0 0.0
    %335 = vmatpush1.msra.mxu0 %v175
    %336 = vmatprep.subr.mxu0 0.0
    %337 = vmatpush1.msra.mxu0 %v174
    %338 = vmatprep.subr.mxu0 0.0
    %339 = vmatpush1.msra.mxu0 %v173
    %340 = vmatprep.subr.mxu0 0.0
    %341 = vmatpush1.msra.mxu0 %v172
    %342 = vmatprep.subr.mxu0 0.0
    %343 = vmatpush1.msra.mxu0 %v171
    %344 = vmatprep.subr.mxu0 0.0
    %345 = vmatpush1.msra.mxu0 %v170
    %346 = vmatprep.subr.mxu0 0.0
    %347 = vmatpush1.msra.mxu0 %v169
    %348 = vmatprep.subr.mxu0 0.0
    %349 = vmatpush1.msra.mxu0 %v168
    %350 = vmatprep.subr.mxu0 0.0
    %351 = vmatpush1.msra.mxu0 %v167
    %352 = vmatprep.subr.mxu0 0.0
    %353 = vmatpush1.msra.mxu0 %v166
    %354 = vmatprep.subr.mxu0 0.0
    %355 = vmatpush1.msra.mxu0 %v165
    %356 = vmatprep.subr.mxu0 0.0
    %357 = vmatpush1.msra.mxu0 %v164
    %358 = vmatprep.subr.mxu0 0.0
    %359 = vmatpush1.msra.mxu0 %v163
    %360 = vmatprep.subr.mxu0 0.0
    %361 = vmatpush1.msra.mxu0 %v162
    %362 = vmatprep.subr.mxu0 0.0
    %363 = vmatpush1.msra.mxu0 %v161
    %364 = vmatprep.subr.mxu0 0.0
    %365 = vmatpush2.msra.mxu0 %v192
    %366 = vmatprep.subr.mxu0 0.0
    %367 = vmatpush2.msra.mxu0 %v191
    %368 = vmatprep.subr.mxu0 0.0
    %369 = vmatpush2.msra.mxu0 %v190
    %370 = vmatprep.subr.mxu0 0.0
    %371 = vmatpush2.msra.mxu0 %v189
    %372 = vmatprep.subr.mxu0 0.0
    %373 = vmatpush2.msra.mxu0 %v188
    %374 = vmatprep.subr.mxu0 0.0
    %375 = vmatpush2.msra.mxu0 %v187
    %376 = vmatprep.subr.mxu0 0.0
    %377 = vmatpush2.msra.mxu0 %v186
    %378 = vmatprep.subr.mxu0 0.0
    %379 = vmatpush2.msra.mxu0 %v185
    %380 = vmatprep.subr.mxu0 0.0
    %381 = vmatpush2.msra.mxu0 %v184
    %382 = vmatprep.subr.mxu0 0.0
    %383 = vmatpush2.msra.mxu0 %v183
    %384 = vmatprep.subr.mxu0 0.0
    %385 = vmatpush2.msra.mxu0 %v182
    %386 = vmatprep.subr.mxu0 0.0
    %387 = vmatpush2.msra.mxu0 %v181
    %388 = vmatprep.subr.mxu0 0.0
    %389 = vmatpush2.msra.mxu0 %v180
    %390 = vmatprep.subr.mxu0 0.0
    %391 = vmatpush2.msra.mxu0 %v179
    %392 = vmatprep.subr.mxu0 0.0
    %393 = vmatpush2.msra.mxu0 %v178
    %394 = vmatprep.subr.mxu0 0.0
    %395 = vmatpush2.msra.mxu0 %v177
    %396 = vmatprep.mubr.f32.mxu0 %v104
    %397 = vmatmul.mubr.f32.gmra.mxu0 %v103
    %v398 = vpop.f32.mrf.mxu0
    %v399 = vadd.f32 %v314, %v398
    %v400 = vpop.f32.mrf.mxu0
    %401 = vmatprep.mubr.f32.mxu0 %v111
    %402 = vmatmul.mubr.f32.gmra.mxu0 %v110
    %v403 = vpop.f32.mrf.mxu0
    %v404 = vadd.f32 %v319, %v403
    %v405 = vpop.f32.mrf.mxu0
    %406 = vmatprep.mubr.f32.mxu0 %v118
    %407 = vmatmul.mubr.f32.gmra.mxu0 %v117
    %v408 = vpop.f32.mrf.mxu0
    %v409 = vadd.f32 %v324, %v408
    %v410 = vpop.f32.mrf.mxu0
    %411 = vmatprep.mubr.f32.mxu0 %v125
    %412 = vmatmul.mubr.f32.gmra.mxu0 %v124
    %v413 = vpop.f32.mrf.mxu0
    %v414 = vadd.f32 %v329, %v413
    %v415 = vpop.f32.mrf.mxu0
    %416 = vdwg.mxu0
    %417 = vmatprep.subr.mxu0 0.0
    %418 = vmatpush1.msra.mxu0 %v208
    %419 = vmatprep.subr.mxu0 0.0
    %420 = vmatpush1.msra.mxu0 %v207
    %421 = vmatprep.subr.mxu0 0.0
    %422 = vmatpush1.msra.mxu0 %v206
    %423 = vmatprep.subr.mxu0 0.0
    %424 = vmatpush1.msra.mxu0 %v205
    %425 = vmatprep.subr.mxu0 0.0
    %426 = vmatpush1.msra.mxu0 %v204
    %427 = vmatprep.subr.mxu0 0.0
    %428 = vmatpush1.msra.mxu0 %v203
    %429 = vmatprep.subr.mxu0 0.0
    %430 = vmatpush1.msra.mxu0 %v202
    %431 = vmatprep.subr.mxu0 0.0
    %432 = vmatpush1.msra.mxu0 %v201
    %433 = vmatprep.subr.mxu0 0.0
    %434 = vmatpush1.msra.mxu0 %v200
    %435 = vmatprep.subr.mxu0 0.0
    %436 = vmatpush1.msra.mxu0 %v199
    %437 = vmatprep.subr.mxu0 0.0
    %438 = vmatpush1.msra.mxu0 %v198
    %439 = vmatprep.subr.mxu0 0.0
    %440 = vmatpush1.msra.mxu0 %v197
    %441 = vmatprep.subr.mxu0 0.0
    %442 = vmatpush1.msra.mxu0 %v196
    %443 = vmatprep.subr.mxu0 0.0
    %444 = vmatpush1.msra.mxu0 %v195
    %445 = vmatprep.subr.mxu0 0.0
    %446 = vmatpush1.msra.mxu0 %v194
    %447 = vmatprep.subr.mxu0 0.0
    %448 = vmatpush1.msra.mxu0 %v193
    %449 = vmatprep.subr.mxu0 0.0
    %450 = vmatpush2.msra.mxu0 %v224
    %451 = vmatprep.subr.mxu0 0.0
    %452 = vmatpush2.msra.mxu0 %v223
    %453 = vmatprep.subr.mxu0 0.0
    %454 = vmatpush2.msra.mxu0 %v222
    %455 = vmatprep.subr.mxu0 0.0
    %456 = vmatpush2.msra.mxu0 %v221
    %457 = vmatprep.subr.mxu0 0.0
    %458 = vmatpush2.msra.mxu0 %v220
    %459 = vmatprep.subr.mxu0 0.0
    %460 = vmatpush2.msra.mxu0 %v219
    %461 = vmatprep.subr.mxu0 0.0
    %462 = vmatpush2.msra.mxu0 %v218
    %463 = vmatprep.subr.mxu0 0.0
    %464 = vmatpush2.msra.mxu0 %v217
    %465 = vmatprep.subr.mxu0 0.0
    %466 = vmatpush2.msra.mxu0 %v216
    %467 = vmatprep.subr.mxu0 0.0
    %468 = vmatpush2.msra.mxu0 %v215
    %469 = vmatprep.subr.mxu0 0.0
    %470 = vmatpush2.msra.mxu0 %v214
    %471 = vmatprep.subr.mxu0 0.0
    %472 = vmatpush2.msra.mxu0 %v213
    %473 = vmatprep.subr.mxu0 0.0
    %474 = vmatpush2.msra.mxu0 %v212
    %475 = vmatprep.subr.mxu0 0.0
    %476 = vmatpush2.msra.mxu0 %v211
    %477 = vmatprep.subr.mxu0 0.0
    %478 = vmatpush2.msra.mxu0 %v210
    %479 = vmatprep.subr.mxu0 0.0
    %480 = vmatpush2.msra.mxu0 %v209
    %481 = vmatprep.mubr.f32.mxu0 %v106
    %482 = vmatmul.mubr.f32.gmra.mxu0 %v105
    %v483 = vpop.f32.mrf.mxu0
    %v484 = vadd.f32 %v399, %v483
    %v485 = vpop.f32.mrf.mxu0
    %486 = vmatprep.mubr.f32.mxu0 %v113
    %487 = vmatmul.mubr.f32.gmra.mxu0 %v112
    %v488 = vpop.f32.mrf.mxu0
    %v489 = vadd.f32 %v404, %v488
    %v490 = vpop.f32.mrf.mxu0
    %491 = vmatprep.mubr.f32.mxu0 %v120
    %492 = vmatmul.mubr.f32.gmra.mxu0 %v119
    %v493 = vpop.f32.mrf.mxu0
    %v494 = vadd.f32 %v409, %v493
    %v495 = vpop.f32.mrf.mxu0
    %496 = vmatprep.mubr.f32.mxu0 %v127
    %497 = vmatmul.mubr.f32.gmra.mxu0 %v126
    %v498 = vpop.f32.mrf.mxu0
    %v499 = vadd.f32 %v414, %v498
    %v500 = vpop.f32.mrf.mxu0
    %501 = vdwg.mxu0
    %502 = vmatprep.subr.mxu0 0.0
    %503 = vmatpush1.msra.mxu0 0.0
    %504 = vmatprep.subr.mxu0 0.0
    %505 = vmatpush1.msra.mxu0 0.0
    %506 = vmatprep.subr.mxu0 0.0
    %507 = vmatpush1.msra.mxu0 0.0
    %508 = vmatprep.subr.mxu0 0.0
    %509 = vmatpush1.msra.mxu0 0.0
    %510 = vmatprep.subr.mxu0 0.0
    %511 = vmatpush1.msra.mxu0 0.0
    %512 = vmatprep.subr.mxu0 0.0
    %513 = vmatpush1.msra.mxu0 0.0
    %514 = vmatprep.subr.mxu0 0.0
    %515 = vmatpush1.msra.mxu0 0.0
    %516 = vmatprep.subr.mxu0 0.0
    %517 = vmatpush1.msra.mxu0 0.0
    %518 = vmatprep.subr.mxu0 0.0
    %519 = vmatpush1.msra.mxu0 0.0
    %520 = vmatprep.subr.mxu0 0.0
    %521 = vmatpush1.msra.mxu0 0.0
    %522 = vmatprep.subr.mxu0 0.0
    %523 = vmatpush1.msra.mxu0 0.0
    %524 = vmatprep.subr.mxu0 0.0
    %525 = vmatpush1.msra.mxu0 0.0
    %526 = vmatprep.subr.mxu0 0.0
    %527 = vmatpush1.msra.mxu0 0.0
    %528 = vmatprep.subr.mxu0 0.0
    %529 = vmatpush1.msra.mxu0 0.0
    %530 = vmatprep.subr.mxu0 0.0
    %531 = vmatpush1.msra.mxu0 %v226
    %532 = vmatprep.subr.mxu0 0.0
    %533 = vmatpush1.msra.mxu0 %v225
    %534 = vmatprep.subr.mxu0 0.0
    %535 = vmatpush2.msra.mxu0 0.0
    %536 = vmatprep.subr.mxu0 0.0
    %537 = vmatpush2.msra.mxu0 0.0
    %538 = vmatprep.subr.mxu0 0.0
    %539 = vmatpush2.msra.mxu0 0.0
    %540 = vmatprep.subr.mxu0 0.0
    %541 = vmatpush2.msra.mxu0 0.0
    %542 = vmatprep.subr.mxu0 0.0
    %543 = vmatpush2.msra.mxu0 0.0
    %544 = vmatprep.subr.mxu0 0.0
    %545 = vmatpush2.msra.mxu0 0.0
    %546 = vmatprep.subr.mxu0 0.0
    %547 = vmatpush2.msra.mxu0 0.0
    %548 = vmatprep.subr.mxu0 0.0
    %549 = vmatpush2.msra.mxu0 0.0
    %550 = vmatprep.subr.mxu0 0.0
    %551 = vmatpush2.msra.mxu0 0.0
    %552 = vmatprep.subr.mxu0 0.0
    %553 = vmatpush2.msra.mxu0 0.0
    %554 = vmatprep.subr.mxu0 0.0
    %555 = vmatpush2.msra.mxu0 0.0
    %556 = vmatprep.subr.mxu0 0.0
    %557 = vmatpush2.msra.mxu0 0.0
    %558 = vmatprep.subr.mxu0 0.0
    %559 = vmatpush2.msra.mxu0 0.0
    %560 = vmatprep.subr.mxu0 0.0
    %561 = vmatpush2.msra.mxu0 0.0
    %562 = vmatprep.subr.mxu0 0.0
    %563 = vmatpush2.msra.mxu0 0.0
    %564 = vmatprep.subr.mxu0 0.0
    %565 = vmatpush2.msra.mxu0 0.0
    %566 = vmatprep.mubr.f32.mxu0 0.0
    %567 = vmatmul.mubr.f32.gmra.mxu0 %v236
    %v568 = vpop.f32.mrf.mxu0
    %v569 = vadd.f32 %v484, %v568
    %v570 = vpop.f32.mrf.mxu0
    %571 = vmatprep.mubr.f32.mxu0 0.0
    %572 = vmatmul.mubr.f32.gmra.mxu0 %v239
    %v573 = vpop.f32.mrf.mxu0
    %v574 = vadd.f32 %v489, %v573
    %v575 = vpop.f32.mrf.mxu0
    %576 = vmatprep.mubr.f32.mxu0 0.0
    %577 = vmatmul.mubr.f32.gmra.mxu0 %v242
    %v578 = vpop.f32.mrf.mxu0
    %v579 = vadd.f32 %v494, %v578
    %v580 = vpop.f32.mrf.mxu0
    %581 = vmatprep.mubr.f32.mxu0 0.0
    %582 = vmatmul.mubr.f32.gmra.mxu0 %v245
    %v583 = vpop.f32.mrf.mxu0
    %v584 = vadd.f32 %v499, %v583
    %v585 = vpop.f32.mrf.mxu0
    %586 = vdwg.mxu0
    %v587 = vmax.f32 %v569, 0.0
    %v588 = vmax.f32 %v574, 0.0
    %v589 = vmax.f32 %v579, 0.0
    %v590 = vmax.f32 %v584, 0.0
    %v591 = vld [vmem:[#allocation7] sm:$0xff]
    %v592 = vld [vmem:[#allocation7 + $0x8] sm:$0xff]
    %v593 = vld [vmem:[#allocation7 + $0x10] sm:$0xff]
    %v594 = vld [vmem:[#allocation7 + $0x18] sm:$0xff]
    %v595 = vld [vmem:[#allocation7 + $0x20] sm:$0xff]
    %v596 = vld [vmem:[#allocation7 + $0x28] sm:$0xff]
    %v597 = vld [vmem:[#allocation7 + $0x30] sm:$0xff]
    %v598 = vld [vmem:[#allocation7 + $0x38] sm:$0xff]
    %v599 = vld [vmem:[#allocation7 + $0x40] sm:$0xff]
    %v600 = vld [vmem:[#allocation7 + $0x48] sm:$0xff]
    %v601 = vld [vmem:[#allocation7 + $0x50] sm:$0xff]
    %v602 = vld [vmem:[#allocation7 + $0x58] sm:$0xff]
    %v603 = vld [vmem:[#allocation7 + $0x60] sm:$0xff]
    %v604 = vld [vmem:[#allocation7 + $0x68] sm:$0xff]
    %v605 = vld [vmem:[#allocation7 + $0x70] sm:$0xff]
    %v606 = vld [vmem:[#allocation7 + $0x78] sm:$0xff]
    %v607 = vld [vmem:[%s4] sm:$0x1]
    %v609 = vlaneseq
    %v610 = vshrl.u32 %v609, 7
    %v611 = vsub.s32 0, %v610
    %v612 = vrot.slane %v607, %v611
    %614 = vmatprep.subr.mxu0 0.0
    %615 = vmatpush1.msra.mxu0 %v606
    %616 = vmatprep.subr.mxu0 0.0
    %617 = vmatpush1.msra.mxu0 %v605
    %618 = vmatprep.subr.mxu0 0.0
    %619 = vmatpush1.msra.mxu0 %v604
    %620 = vmatprep.subr.mxu0 0.0
    %621 = vmatpush1.msra.mxu0 %v603
    %622 = vmatprep.subr.mxu0 0.0
    %623 = vmatpush1.msra.mxu0 %v602
    %624 = vmatprep.subr.mxu0 0.0
    %625 = vmatpush1.msra.mxu0 %v601
    %626 = vmatprep.subr.mxu0 0.0
    %627 = vmatpush1.msra.mxu0 %v600
    %628 = vmatprep.subr.mxu0 0.0
    %629 = vmatpush1.msra.mxu0 %v599
    %630 = vmatprep.subr.mxu0 0.0
    %631 = vmatpush1.msra.mxu0 %v598
    %632 = vmatprep.subr.mxu0 0.0
    %633 = vmatpush1.msra.mxu0 %v597
    %634 = vmatprep.subr.mxu0 0.0
    %635 = vmatpush1.msra.mxu0 %v596
    %636 = vmatprep.subr.mxu0 0.0
    %637 = vmatpush1.msra.mxu0 %v595
    %638 = vmatprep.subr.mxu0 0.0
    %639 = vmatpush1.msra.mxu0 %v594
    %640 = vmatprep.subr.mxu0 0.0
    %641 = vmatpush1.msra.mxu0 %v593
    %642 = vmatprep.subr.mxu0 0.0
    %643 = vmatpush1.msra.mxu0 %v592
    %644 = vmatprep.subr.mxu0 0.0
    %645 = vmatpush1.msra.mxu0 %v591
    %646 = vmatprep.subr.mxu0 0.0
    %647 = vmatpush2.msra.mxu0 0.0
    %648 = vmatprep.subr.mxu0 0.0
    %649 = vmatpush2.msra.mxu0 0.0
    %650 = vmatprep.subr.mxu0 0.0
    %651 = vmatpush2.msra.mxu0 0.0
    %652 = vmatprep.subr.mxu0 0.0
    %653 = vmatpush2.msra.mxu0 0.0
    %654 = vmatprep.subr.mxu0 0.0
    %655 = vmatpush2.msra.mxu0 0.0
    %656 = vmatprep.subr.mxu0 0.0
    %657 = vmatpush2.msra.mxu0 0.0
    %658 = vmatprep.subr.mxu0 0.0
    %659 = vmatpush2.msra.mxu0 0.0
    %660 = vmatprep.subr.mxu0 0.0
    %661 = vmatpush2.msra.mxu0 0.0
    %662 = vmatprep.subr.mxu0 0.0
    %663 = vmatpush2.msra.mxu0 0.0
    %664 = vmatprep.subr.mxu0 0.0
    %665 = vmatpush2.msra.mxu0 0.0
    %666 = vmatprep.subr.mxu0 0.0
    %667 = vmatpush2.msra.mxu0 0.0
    %668 = vmatprep.subr.mxu0 0.0
    %669 = vmatpush2.msra.mxu0 0.0
    %670 = vmatprep.subr.mxu0 0.0
    %671 = vmatpush2.msra.mxu0 0.0
    %672 = vmatprep.subr.mxu0 0.0
    %673 = vmatpush2.msra.mxu0 0.0
    %674 = vmatprep.subr.mxu0 0.0
    %675 = vmatpush2.msra.mxu0 0.0
    %676 = vmatprep.subr.mxu0 0.0
    %677 = vmatpush2.msra.mxu0 0.0
    %678 = vmatprep.mubr.f32.mxu0 0.0
    %679 = vmatmul.mubr.f32.gmra.mxu0 %v587
    %v680 = vpop.f32.mrf.mxu0
    %v681 = vadd.f32 %v612, %v680
    %v682 = vpop.f32.mrf.mxu0
    %683 = vmatprep.mubr.f32.mxu0 0.0
    %684 = vmatmul.mubr.f32.gmra.mxu0 %v588
    %v685 = vpop.f32.mrf.mxu0
    %v686 = vadd.f32 %v612, %v685
    %v687 = vpop.f32.mrf.mxu0
    %688 = vmatprep.mubr.f32.mxu0 0.0
    %689 = vmatmul.mubr.f32.gmra.mxu0 %v589
    %v690 = vpop.f32.mrf.mxu0
    %v691 = vadd.f32 %v612, %v690
    %v692 = vpop.f32.mrf.mxu0
    %693 = vmatprep.mubr.f32.mxu0 0.0
    %694 = vmatmul.mubr.f32.gmra.mxu0 %v590
    %v695 = vpop.f32.mrf.mxu0
    %v696 = vadd.f32 %v612, %v695
    %v697 = vpop.f32.mrf.mxu0
    %698 = vdwg.mxu0
    %v699 = vmax.f32 %v681, 0.0
    %v700 = vmax.f32 %v686, 0.0
    %v701 = vmax.f32 %v691, 0.0
    %v702 = vmax.f32 %v696, 0.0
    %v703 = vld [vmem:[#allocation8] sm:$0xff]
    %v704 = vld [vmem:[#allocation8 + $0x8] sm:$0xff]
    %v705 = vld [vmem:[#allocation8 + $0x10] sm:$0xff]
    %v706 = vld [vmem:[#allocation8 + $0x18] sm:$0xff]
    %v707 = vld [vmem:[#allocation8 + $0x20] sm:$0xff]
    %v708 = vld [vmem:[#allocation8 + $0x28] sm:$0xff]
    %v709 = vld [vmem:[#allocation8 + $0x30] sm:$0xff]
    %v710 = vld [vmem:[#allocation8 + $0x38] sm:$0xff]
    %v711 = vld [vmem:[#allocation8 + $0x40] sm:$0xff]
    %v712 = vld [vmem:[#allocation8 + $0x48] sm:$0xff]
    %v713 = vld [vmem:[#allocation8 + $0x50] sm:$0xff]
    %v714 = vld [vmem:[#allocation8 + $0x58] sm:$0xff]
    %v715 = vld [vmem:[#allocation8 + $0x60] sm:$0xff]
    %v716 = vld [vmem:[#allocation8 + $0x68] sm:$0xff]
    %v717 = vld [vmem:[#allocation8 + $0x70] sm:$0xff]
    %v718 = vld [vmem:[#allocation8 + $0x78] sm:$0xff]
    %v719 = vld [vmem:[%s6] sm:$0x1]
    %v721 = vlaneseq
    %v722 = vshrl.u32 %v721, 7
    %v723 = vsub.s32 0, %v722
    %v724 = vrot.slane %v719, %v723
    %726 = vmatprep.subr.mxu0 0.0
    %727 = vmatpush1.msra.mxu0 %v718
    %728 = vmatprep.subr.mxu0 0.0
    %729 = vmatpush1.msra.mxu0 %v717
    %730 = vmatprep.subr.mxu0 0.0
    %731 = vmatpush1.msra.mxu0 %v716
    %732 = vmatprep.subr.mxu0 0.0
    %733 = vmatpush1.msra.mxu0 %v715
    %734 = vmatprep.subr.mxu0 0.0
    %735 = vmatpush1.msra.mxu0 %v714
    %736 = vmatprep.subr.mxu0 0.0
    %737 = vmatpush1.msra.mxu0 %v713
    %738 = vmatprep.subr.mxu0 0.0
    %739 = vmatpush1.msra.mxu0 %v712
    %740 = vmatprep.subr.mxu0 0.0
    %741 = vmatpush1.msra.mxu0 %v711
    %742 = vmatprep.subr.mxu0 0.0
    %743 = vmatpush1.msra.mxu0 %v710
    %744 = vmatprep.subr.mxu0 0.0
    %745 = vmatpush1.msra.mxu0 %v709
    %746 = vmatprep.subr.mxu0 0.0
    %747 = vmatpush1.msra.mxu0 %v708
    %748 = vmatprep.subr.mxu0 0.0
    %749 = vmatpush1.msra.mxu0 %v707
    %750 = vmatprep.subr.mxu0 0.0
    %751 = vmatpush1.msra.mxu0 %v706
    %752 = vmatprep.subr.mxu0 0.0
    %753 = vmatpush1.msra.mxu0 %v705
    %754 = vmatprep.subr.mxu0 0.0
    %755 = vmatpush1.msra.mxu0 %v704
    %756 = vmatprep.subr.mxu0 0.0
    %757 = vmatpush1.msra.mxu0 %v703
    %758 = vmatprep.subr.mxu0 0.0
    %759 = vmatpush2.msra.mxu0 0.0
    %760 = vmatprep.subr.mxu0 0.0
    %761 = vmatpush2.msra.mxu0 0.0
    %762 = vmatprep.subr.mxu0 0.0
    %763 = vmatpush2.msra.mxu0 0.0
    %764 = vmatprep.subr.mxu0 0.0
    %765 = vmatpush2.msra.mxu0 0.0
    %766 = vmatprep.subr.mxu0 0.0
    %767 = vmatpush2.msra.mxu0 0.0
    %768 = vmatprep.subr.mxu0 0.0
    %769 = vmatpush2.msra.mxu0 0.0
    %770 = vmatprep.subr.mxu0 0.0
    %771 = vmatpush2.msra.mxu0 0.0
    %772 = vmatprep.subr.mxu0 0.0
    %773 = vmatpush2.msra.mxu0 0.0
    %774 = vmatprep.subr.mxu0 0.0
    %775 = vmatpush2.msra.mxu0 0.0
    %776 = vmatprep.subr.mxu0 0.0
    %777 = vmatpush2.msra.mxu0 0.0
    %778 = vmatprep.subr.mxu0 0.0
    %779 = vmatpush2.msra.mxu0 0.0
    %780 = vmatprep.subr.mxu0 0.0
    %781 = vmatpush2.msra.mxu0 0.0
    %782 = vmatprep.subr.mxu0 0.0
    %783 = vmatpush2.msra.mxu0 0.0
    %784 = vmatprep.subr.mxu0 0.0
    %785 = vmatpush2.msra.mxu0 0.0
    %786 = vmatprep.subr.mxu0 0.0
    %787 = vmatpush2.msra.mxu0 0.0
    %788 = vmatprep.subr.mxu0 0.0
    %789 = vmatpush2.msra.mxu0 0.0
    %790 = vmatprep.mubr.f32.mxu0 0.0
    %791 = vmatmul.mubr.f32.gmra.mxu0 %v699
    %v792 = vpop.f32.mrf.mxu0
    %v793 = vadd.f32 %v724, %v792
    %v794 = vpop.f32.mrf.mxu0
    %795 = vmatprep.mubr.f32.mxu0 0.0
    %796 = vmatmul.mubr.f32.gmra.mxu0 %v700
    %v797 = vpop.f32.mrf.mxu0
    %v798 = vadd.f32 %v724, %v797
    %v799 = vpop.f32.mrf.mxu0
    %800 = vmatprep.mubr.f32.mxu0 0.0
    %801 = vmatmul.mubr.f32.gmra.mxu0 %v701
    %v802 = vpop.f32.mrf.mxu0
    %v803 = vadd.f32 %v724, %v802
    %v804 = vpop.f32.mrf.mxu0
    %805 = vmatprep.mubr.f32.mxu0 0.0
    %806 = vmatmul.mubr.f32.gmra.mxu0 %v702
    %v807 = vpop.f32.mrf.mxu0
    %v808 = vadd.f32 %v724, %v807
    %v809 = vpop.f32.mrf.mxu0
    %810 = vdwg.mxu0
    %v811 = vmax.f32 %v793, 0.0
    %v812 = vmax.f32 %v798, 0.0
    %v813 = vmax.f32 %v803, 0.0
    %v814 = vmax.f32 %v808, 0.0
    %v815 = vld [vmem:[#allocation10] sm:$0xff]
    %v816 = vld [vmem:[#allocation10 + $0x8] sm:$0xff]
    %v817 = vld [vmem:[#allocation10 + $0x10] sm:$0xff]
    %v818 = vld [vmem:[#allocation10 + $0x18] sm:$0xff]
    %v819 = vld [vmem:[#allocation10 + $0x20] sm:$0xff]
    %v820 = vld [vmem:[#allocation10 + $0x28] sm:$0xff]
    %v821 = vld [vmem:[#allocation10 + $0x30] sm:$0xff]
    %v822 = vld [vmem:[#allocation10 + $0x38] sm:$0xff]
    %v823 = vld [vmem:[#allocation10 + $0x40] sm:$0xff]
    %v824 = vld [vmem:[#allocation10 + $0x48] sm:$0xff]
    %v825 = vld [vmem:[#allocation10 + $0x50] sm:$0xff]
    %v826 = vld [vmem:[#allocation10 + $0x58] sm:$0xff]
    %v827 = vld [vmem:[#allocation10 + $0x60] sm:$0xff]
    %v828 = vld [vmem:[#allocation10 + $0x68] sm:$0xff]
    %v829 = vld [vmem:[#allocation10 + $0x70] sm:$0xff]
    %v830 = vld [vmem:[#allocation10 + $0x78] sm:$0xff]
    %v831 = vld [vmem:[%s8] sm:$0x1]
    %v833 = vlaneseq
    %v834 = vshrl.u32 %v833, 7
    %v835 = vsub.s32 0, %v834
    %v836 = vrot.slane %v831, %v835
    %838 = vmatprep.subr.mxu0 0.0
    %839 = vmatpush1.msra.mxu0 %v830
    %840 = vmatprep.subr.mxu0 0.0
    %841 = vmatpush1.msra.mxu0 %v829
    %842 = vmatprep.subr.mxu0 0.0
    %843 = vmatpush1.msra.mxu0 %v828
    %844 = vmatprep.subr.mxu0 0.0
    %845 = vmatpush1.msra.mxu0 %v827
    %846 = vmatprep.subr.mxu0 0.0
    %847 = vmatpush1.msra.mxu0 %v826
    %848 = vmatprep.subr.mxu0 0.0
    %849 = vmatpush1.msra.mxu0 %v825
    %850 = vmatprep.subr.mxu0 0.0
    %851 = vmatpush1.msra.mxu0 %v824
    %852 = vmatprep.subr.mxu0 0.0
    %853 = vmatpush1.msra.mxu0 %v823
    %854 = vmatprep.subr.mxu0 0.0
    %855 = vmatpush1.msra.mxu0 %v822
    %856 = vmatprep.subr.mxu0 0.0
    %857 = vmatpush1.msra.mxu0 %v821
    %858 = vmatprep.subr.mxu0 0.0
    %859 = vmatpush1.msra.mxu0 %v820
    %860 = vmatprep.subr.mxu0 0.0
    %861 = vmatpush1.msra.mxu0 %v819
    %862 = vmatprep.subr.mxu0 0.0
    %863 = vmatpush1.msra.mxu0 %v818
    %864 = vmatprep.subr.mxu0 0.0
    %865 = vmatpush1.msra.mxu0 %v817
    %866 = vmatprep.subr.mxu0 0.0
    %867 = vmatpush1.msra.mxu0 %v816
    %868 = vmatprep.subr.mxu0 0.0
    %869 = vmatpush1.msra.mxu0 %v815
    %870 = vmatprep.subr.mxu0 0.0
    %871 = vmatpush2.msra.mxu0 0.0
    %872 = vmatprep.subr.mxu0 0.0
    %873 = vmatpush2.msra.mxu0 0.0
    %874 = vmatprep.subr.mxu0 0.0
    %875 = vmatpush2.msra.mxu0 0.0
    %876 = vmatprep.subr.mxu0 0.0
    %877 = vmatpush2.msra.mxu0 0.0
    %878 = vmatprep.subr.mxu0 0.0
    %879 = vmatpush2.msra.mxu0 0.0
    %880 = vmatprep.subr.mxu0 0.0
    %881 = vmatpush2.msra.mxu0 0.0
    %882 = vmatprep.subr.mxu0 0.0
    %883 = vmatpush2.msra.mxu0 0.0
    %884 = vmatprep.subr.mxu0 0.0
    %885 = vmatpush2.msra.mxu0 0.0
    %886 = vmatprep.subr.mxu0 0.0
    %887 = vmatpush2.msra.mxu0 0.0
    %888 = vmatprep.subr.mxu0 0.0
    %889 = vmatpush2.msra.mxu0 0.0
    %890 = vmatprep.subr.mxu0 0.0
    %891 = vmatpush2.msra.mxu0 0.0
    %892 = vmatprep.subr.mxu0 0.0
    %893 = vmatpush2.msra.mxu0 0.0
    %894 = vmatprep.subr.mxu0 0.0
    %895 = vmatpush2.msra.mxu0 0.0
    %896 = vmatprep.subr.mxu0 0.0
    %897 = vmatpush2.msra.mxu0 0.0
    %898 = vmatprep.subr.mxu0 0.0
    %899 = vmatpush2.msra.mxu0 0.0
    %900 = vmatprep.subr.mxu0 0.0
    %901 = vmatpush2.msra.mxu0 0.0
    %902 = vmatprep.mubr.f32.mxu0 0.0
    %903 = vmatmul.mubr.f32.gmra.mxu0 %v811
    %v904 = vpop.f32.mrf.mxu0
    %v905 = vadd.f32 %v836, %v904
    %v906 = vpop.f32.mrf.mxu0
    %907 = vmatprep.mubr.f32.mxu0 0.0
    %908 = vmatmul.mubr.f32.gmra.mxu0 %v812
    %v909 = vpop.f32.mrf.mxu0
    %v910 = vadd.f32 %v836, %v909
    %v911 = vpop.f32.mrf.mxu0
    %912 = vmatprep.mubr.f32.mxu0 0.0
    %913 = vmatmul.mubr.f32.gmra.mxu0 %v813
    %v914 = vpop.f32.mrf.mxu0
    %v915 = vadd.f32 %v836, %v914
    %v916 = vpop.f32.mrf.mxu0
    %917 = vmatprep.mubr.f32.mxu0 0.0
    %918 = vmatmul.mubr.f32.gmra.mxu0 %v814
    %v919 = vpop.f32.mrf.mxu0
    %v920 = vadd.f32 %v836, %v919
    %v921 = vpop.f32.mrf.mxu0
    %922 = vdwg.mxu0
    %v923 = vlaneseq
    %v924 = vand.u32 %v923, 127
    %vm925 = vcmp.lt.s32.totalorder %v924, 10
    %v926 = vsel %vm925, %v905, -inf
    %v927 = vsel %vm925, %v910, -inf
    %v928 = vsel %vm925, %v915, -inf
    %v929 = vsel %vm925, %v920, -inf
    %930 = vmax.xlane.f32.xlu0 %v926
    %v931 = vpop.xlane.xlu0 %930
    %932 = vmax.xlane.f32.xlu0 %v927
    %v933 = vpop.xlane.xlu0 %932
    %934 = vmax.xlane.f32.xlu0 %v928
    %v935 = vpop.xlane.xlu0 %934
    %936 = vmax.xlane.f32.xlu0 %v929
    %v937 = vpop.xlane.xlu0 %936
    %v938 = vsub.f32 %v926, %v931
    %v939 = vsub.f32 %v927, %v933
    %v940 = vsub.f32 %v928, %v935
    %v941 = vsub.f32 %v929, %v937
    %v942 = vmul.f32 %v938, 1.442695
    %v943 = vpow.pop %v942
    %v944 = vmul.f32 %v939, 1.442695
    %v945 = vpow.pop %v944
    %v946 = vmul.f32 %v940, 1.442695
    %v947 = vpow.pop %v946
    %v948 = vmul.f32 %v941, 1.442695
    %v949 = vpow.pop %v948
    %950 = vadd.xlane.f32.xlu0 %v943
    %v951 = vpop.xlane.xlu0 %950
    %952 = vadd.xlane.f32.xlu0 %v945
    %v953 = vpop.xlane.xlu0 %952
    %954 = vadd.xlane.f32.xlu0 %v947
    %v955 = vpop.xlane.xlu0 %954
    %956 = vadd.xlane.f32.xlu0 %v949
    %v957 = vpop.xlane.xlu0 %956
    %v958 = vlog2.pop %v951
    %v959 = vmul.f32 %v958, 0.6931472
    %v960 = vlog2.pop %v953
    %v961 = vmul.f32 %v960, 0.6931472
    %v962 = vlog2.pop %v955
    %v963 = vmul.f32 %v962, 0.6931472
    %v964 = vlog2.pop %v957
    %v965 = vmul.f32 %v964, 0.6931472
    %v966 = vsub.f32 %v938, %v959
    %v967 = vsub.f32 %v939, %v961
    %v968 = vsub.f32 %v940, %v963
    %v969 = vsub.f32 %v941, %v965
    %v970 = vpack.c.bf16 %v967, %v966
    %v971 = vpack.c.bf16 %v969, %v968
    %v974 = vunpack.c.l.b16 %v970
    %v975 = vunpack.c.h.b16 %v970
    %v976 = vunpack.c.l.b16 %v971
    %v977 = vunpack.c.h.b16 %v971
    %v978 = vpack.c.b16 %v974, %v974
    %v979 = vpack.c.b16 %v975, %v975
    %v980 = vpack.c.b16 %v976, %v976
    %v981 = vpack.c.b16 %v977, %v977
    %986 = vst [vmem:[#allocation11] sm:$0xf] %v978
    %987 = vst [vmem:[#allocation11 + $0x4] sm:$0xf] %v979
    %988 = vst [vmem:[#allocation11 + $0x8] sm:$0xf] %v980
    %989 = vst [vmem:[#allocation11 + $0xc] sm:$0xf] %v981
    // Predicated region
    $region58: #{tpu_custom_call.1} parent=1 // pred_check
      _
    $region59: #{tpu_custom_call.1} parent=1 // pred_check_branch
      %991 = sbr.rel (0) target = $region61
    $region60: #{tpu_custom_call.1} parent=1 // pred_region
      %s993 = ssub.s32 256, 256
      %994 = vsyncadd [#allocation4], %s993
      %s995 = sshll.u32 [#allocation11], 4
      %s996 = int_to_ptr.vmem [resolvable:$true] %s995
      %1001 = dma.vmem_to_hbm [thread:$0]  %s996, 256, %s9, [#allocation4], 64, 64, 4
    $region61: #{tpu_custom_call.1} parent=1 // pred_fallthru
      _
    // Predicated region
    $region62: #{tpu_custom_call.1} parent=1 // pred_check
      _
    $region63: #{tpu_custom_call.1} parent=1 // pred_check_branch
      %1003 = sbr.rel (0) target = $region65
    $region64: #{tpu_custom_call.1} parent=1 // pred_region
      %1004 = dma.done [#allocation4], 256
    $region65: #{tpu_custom_call.1} parent=1 // pred_fallthru
      _
    %1005 = vsyncpa [#allocation3], 1
    %1006 = vsyncpa [#allocation6], 1
    %1007 = vsyncpa [#allocation9], 1
    %1008 = vsyncpa [#allocation4], 1

</llo_original>
